<compile_context>
chip_gen: v7x
topology: tpu7x:2x2x1
jax: 0.10.0
libtpu: 0.0.40
codegen_flags: <defaults>
</compile_context>

<pallas_src>
import jax
import jax.numpy as jnp
from jax.experimental import pallas as pl
from jax.experimental.pallas import tpu as pltpu

CIN = 3
COUT = 8
PAD = 1
MIN_VALUE = 0.0   # Model() default
MAX_VALUE = 1.0   # Model() default


def _conv1x1_pad_clamp_kernel(w_ref, b_ref, x_ref, o_ref):
    # w_ref: SMEM (COUT, CIN) f32
    # b_ref: SMEM (COUT,)    f32
    # x_ref: VMEM (NB, CIN, H, W)          f32  -- unpadded input images
    # o_ref: VMEM (NB, COUT, H+2P, W+2P)   f32  -- padded, clamped output
    x = x_ref[...]                       # (NB, CIN, H, W)
    nb, _, h, w = x.shape
    hp, wp = h + 2 * PAD, w + 2 * PAD

    for co in range(COUT):
        b_co = b_ref[co]
        # Border pixels: 1x1 conv over the zero pad == bias -> clamp(bias).
        border = jnp.minimum(jnp.maximum(b_co, MIN_VALUE), MAX_VALUE)
        o_ref[:, co, :, :] = jnp.full((nb, hp, wp), border, dtype=o_ref.dtype)

        # Interior: 3-term channel contraction as scalar*vector FMAs (+bias).
        acc = w_ref[co, 0] * x[:, 0]
        for k in range(1, CIN):
            acc = acc + w_ref[co, k] * x[:, k]
        acc = acc + b_co
        acc = jnp.minimum(jnp.maximum(acc, MIN_VALUE), MAX_VALUE)
        o_ref[:, co, PAD:h + PAD, PAD:w + PAD] = acc.astype(o_ref.dtype)


def _round_up(v, m):
    return ((v + m - 1) // m) * m


def _pick_batch_block(n, per_image_vmem_bytes, budget_bytes=4 * 1024 * 1024):
    """Largest divisor of n within the VMEM budget, keeping >= 2 grid steps."""
    cap = max(1, budget_bytes // max(per_image_vmem_bytes, 1))
    if n >= 2:
        cap = min(cap, max(1, n // 2))   # >= 2 parallel steps (v7x megacore)
    nb = 1
    for d in range(1, n + 1):
        if n % d == 0 and d <= cap:
            nb = d
    return nb


def conv1x1_pad1_clamp(x_nchw, weight, bias):
    """x_nchw: (N, 3, H, W); weight: (8, 3); bias: (8,). Returns (N, 8, H+2, W+2)."""
    n, cin, h, w = x_nchw.shape
    assert cin == CIN
    hp, wp = h + 2 * PAD, w + 2 * PAD

    x_f = x_nchw.astype(jnp.float32)
    w_f = weight.astype(jnp.float32).reshape(COUT, CIN)
    b_f = bias.astype(jnp.float32).reshape(COUT)

    # Per-image VMEM footprint (sublane/lane padded), used to size batch blocks.
    in_tile = CIN * _round_up(h, 8) * _round_up(w, 128) * 4
    out_tile = COUT * _round_up(hp, 8) * _round_up(wp, 128) * 4
    per_image = in_tile + out_tile
    # TODO(synk): images too large for a single full-image VMEM block would need
    # an additional row-tiling axis; not needed at this module's scale.
    nb = _pick_batch_block(n, per_image)
    grid = (n // nb,)

    flops = int(2 * n * COUT * CIN * h * w)
    bytes_accessed = int(
        4 * (n * CIN * h * w + n * COUT * hp * wp + COUT * CIN + COUT))

    return pl.pallas_call(
        _conv1x1_pad_clamp_kernel,
        out_shape=jax.ShapeDtypeStruct((n, COUT, hp, wp), jnp.float32),
        grid=grid,
        in_specs=[
            pl.BlockSpec(memory_space=pltpu.MemorySpace.SMEM),     # weight
            pl.BlockSpec(memory_space=pltpu.MemorySpace.SMEM),     # bias
            pl.BlockSpec((nb, CIN, h, w), lambda i: (i, 0, 0, 0)),  # input
        ],
        out_specs=pl.BlockSpec((nb, COUT, hp, wp), lambda i: (i, 0, 0, 0)),
        compiler_params=pltpu.CompilerParams(
            dimension_semantics=("parallel",),
            vmem_limit_bytes=max(2 * nb * per_image + (1 << 20),
                                 16 * 1024 * 1024),
        ),
        cost_estimate=pl.CostEstimate(
            flops=flops, transcendentals=0, bytes_accessed=bytes_accessed),
    )(w_f, b_f, x_f)


if __name__ == "__main__":
    key = jax.random.PRNGKey(0)
    kx, kw, kb = jax.random.split(key, 3)

    # Small, module-consistent shapes: N=2, C=3, H=W=16.
    x = jax.random.normal(kx, (2, CIN, 16, 16), dtype=jnp.float32)

    # Deterministic synthetic Conv2d(3, 8, 1) parameters.
    fan_in = CIN * 1 * 1
    bound = 1.0 / (fan_in ** 0.5)
    weight = jax.random.uniform(kw, (COUT, CIN), jnp.float32, -bound, bound)
    bias = jax.random.uniform(kb, (COUT,), jnp.float32, -bound, bound)

    out = conv1x1_pad1_clamp(x, weight, bias)
    out = jax.block_until_ready(out)

    # Pure-JAX reference.
    x_pad = jnp.pad(x, ((0, 0), (0, 0), (1, 1), (1, 1)))
    ref = jnp.einsum("nchw,oc->nohw", x_pad, weight) + bias[None, :, None, None]
    ref = jnp.clip(ref, MIN_VALUE, MAX_VALUE)

    assert out.shape == (2, COUT, 18, 18)
    assert jnp.allclose(out, ref, atol=1e-5, rtol=1e-5), "mismatch vs reference"
    print("KERNEL_OK")
</pallas_src>

<mosaic_0001>
module attributes {stable_mosaic.version = 11 : i64} {
  func.func @_conv1x1_pad_clamp_kernel(%arg0: i32, %arg1: memref<8x3xf32, #tpu.memory_space<smem>>, %arg2: memref<8xf32, #tpu.memory_space<smem>>, %arg3: memref<1x3x16x16xf32, #tpu.memory_space<vmem>>, %arg4: memref<1x8x18x18xf32, #tpu.memory_space<vmem>>) attributes {dimension_semantics = [#tpu.dimension_semantics<parallel>], iteration_bounds = array<i64: 2>, scalar_prefetch = 0 : i64, scratch_operands = 0 : i64, tpu.core_type = #tpu.core_type<tc>, window_params = [{transform_indices = @transform_0, window_bounds = array<i64: 8, 3>}, {transform_indices = @transform_1, window_bounds = array<i64: 8>}, {transform_indices = @transform_2, window_bounds = array<i64: 1, 3, 16, 16>}, {transform_indices = @transform_3, window_bounds = array<i64: 1, 8, 18, 18>}]} {
    %c0 = arith.constant 0 : index
    %c0_0 = arith.constant 0 : index
    %c0_1 = arith.constant 0 : index
    %c0_2 = arith.constant 0 : index
    %0 = vector.load %arg3[%c0, %c0_0, %c0_1, %c0_2] : memref<1x3x16x16xf32, #tpu.memory_space<vmem>>, vector<1x3x16x16xf32>
    %c0_3 = arith.constant 0 : index
    %1 = memref.load %arg2[%c0_3] : memref<8xf32, #tpu.memory_space<smem>>
    %cst = arith.constant 0.000000e+00 : f32
    %2 = arith.maximumf %1, %cst : f32
    %cst_4 = arith.constant 1.000000e+00 : f32
    %3 = arith.minimumf %2, %cst_4 : f32
    %4 = vector.broadcast %3 : f32 to vector<1x18x18xf32>
    %c0_5 = arith.constant 0 : index
    %c0_6 = arith.constant 0 : index
    %c0_7 = arith.constant 0 : index
    %c0_8 = arith.constant 0 : index
    %5 = vector.load %arg4[%c0_5, %c0_6, %c0_7, %c0_8] : memref<1x8x18x18xf32, #tpu.memory_space<vmem>>, vector<1x1x18x18xf32>
    %6 = vector.shape_cast %5 : vector<1x1x18x18xf32> to vector<1x18x18xf32>
    %7 = vector.shape_cast %4 : vector<1x18x18xf32> to vector<1x1x18x18xf32>
    tpu.vector_store %arg4[%c0_5, %c0_6, %c0_7, %c0_8], %7 {strides = array<i32>} : memref<1x8x18x18xf32, #tpu.memory_space<vmem>>, vector<1x1x18x18xf32>,
    %c0_9 = arith.constant 0 : index
    %c0_10 = arith.constant 0 : index
    %8 = memref.load %arg1[%c0_9, %c0_10] : memref<8x3xf32, #tpu.memory_space<smem>>
    %9 = vector.extract_strided_slice %0 {offsets = [0, 0, 0, 0], sizes = [1, 1, 16, 16], strides = [1, 1, 1, 1]} : vector<1x3x16x16xf32> to vector<1x1x16x16xf32>
    %10 = vector.shape_cast %9 : vector<1x1x16x16xf32> to vector<1x16x16xf32>
    %11 = vector.broadcast %8 : f32 to vector<1x16x16xf32>
    %12 = arith.mulf %11, %10 : vector<1x16x16xf32>
    %c0_11 = arith.constant 0 : index
    %c1 = arith.constant 1 : index
    %13 = memref.load %arg1[%c0_11, %c1] : memref<8x3xf32, #tpu.memory_space<smem>>
    %14 = vector.extract_strided_slice %0 {offsets = [0, 1, 0, 0], sizes = [1, 1, 16, 16], strides = [1, 1, 1, 1]} : vector<1x3x16x16xf32> to vector<1x1x16x16xf32>
    %15 = vector.shape_cast %14 : vector<1x1x16x16xf32> to vector<1x16x16xf32>
    %16 = vector.broadcast %13 : f32 to vector<1x16x16xf32>
    %17 = arith.mulf %16, %15 : vector<1x16x16xf32>
    %18 = arith.addf %12, %17 : vector<1x16x16xf32>
    %c0_12 = arith.constant 0 : index
    %c2 = arith.constant 2 : index
    %19 = memref.load %arg1[%c0_12, %c2] : memref<8x3xf32, #tpu.memory_space<smem>>
    %20 = vector.extract_strided_slice %0 {offsets = [0, 2, 0, 0], sizes = [1, 1, 16, 16], strides = [1, 1, 1, 1]} : vector<1x3x16x16xf32> to vector<1x1x16x16xf32>
    %21 = vector.shape_cast %20 : vector<1x1x16x16xf32> to vector<1x16x16xf32>
    %22 = vector.broadcast %19 : f32 to vector<1x16x16xf32>
    %23 = arith.mulf %22, %21 : vector<1x16x16xf32>
    %24 = arith.addf %18, %23 : vector<1x16x16xf32>
    %25 = vector.broadcast %1 : f32 to vector<1x16x16xf32>
    %26 = arith.addf %24, %25 : vector<1x16x16xf32>
    %cst_13 = arith.constant 0.000000e+00 : f32
    %27 = vector.broadcast %cst_13 : f32 to vector<1x16x16xf32>
    %28 = arith.maximumf %26, %27 : vector<1x16x16xf32>
    %cst_14 = arith.constant 1.000000e+00 : f32
    %29 = vector.broadcast %cst_14 : f32 to vector<1x16x16xf32>
    %30 = arith.minimumf %28, %29 : vector<1x16x16xf32>
    %c0_15 = arith.constant 0 : index
    %c0_16 = arith.constant 0 : index
    %c1_17 = arith.constant 1 : index
    %c1_18 = arith.constant 1 : index
    %31 = vector.load %arg4[%c0_15, %c0_16, %c1_17, %c1_18] : memref<1x8x18x18xf32, #tpu.memory_space<vmem>>, vector<1x1x16x16xf32>
    %32 = vector.shape_cast %31 : vector<1x1x16x16xf32> to vector<1x16x16xf32>
    %33 = vector.shape_cast %30 : vector<1x16x16xf32> to vector<1x1x16x16xf32>
    tpu.vector_store %arg4[%c0_15, %c0_16, %c1_17, %c1_18], %33 {strides = array<i32>} : memref<1x8x18x18xf32, #tpu.memory_space<vmem>>, vector<1x1x16x16xf32>,
    %c1_19 = arith.constant 1 : index
    %34 = memref.load %arg2[%c1_19] : memref<8xf32, #tpu.memory_space<smem>>
    %cst_20 = arith.constant 0.000000e+00 : f32
    %35 = arith.maximumf %34, %cst_20 : f32
    %cst_21 = arith.constant 1.000000e+00 : f32
    %36 = arith.minimumf %35, %cst_21 : f32
    %37 = vector.broadcast %36 : f32 to vector<1x18x18xf32>
    %c0_22 = arith.constant 0 : index
    %c1_23 = arith.constant 1 : index
    %c0_24 = arith.constant 0 : index
    %c0_25 = arith.constant 0 : index
    %38 = vector.load %arg4[%c0_22, %c1_23, %c0_24, %c0_25] : memref<1x8x18x18xf32, #tpu.memory_space<vmem>>, vector<1x1x18x18xf32>
    %39 = vector.shape_cast %38 : vector<1x1x18x18xf32> to vector<1x18x18xf32>
    %40 = vector.shape_cast %37 : vector<1x18x18xf32> to vector<1x1x18x18xf32>
    tpu.vector_store %arg4[%c0_22, %c1_23, %c0_24, %c0_25], %40 {strides = array<i32>} : memref<1x8x18x18xf32, #tpu.memory_space<vmem>>, vector<1x1x18x18xf32>,
    %c1_26 = arith.constant 1 : index
    %c0_27 = arith.constant 0 : index
    %41 = memref.load %arg1[%c1_26, %c0_27] : memref<8x3xf32, #tpu.memory_space<smem>>
    %42 = vector.extract_strided_slice %0 {offsets = [0, 0, 0, 0], sizes = [1, 1, 16, 16], strides = [1, 1, 1, 1]} : vector<1x3x16x16xf32> to vector<1x1x16x16xf32>
    %43 = vector.shape_cast %42 : vector<1x1x16x16xf32> to vector<1x16x16xf32>
    %44 = vector.broadcast %41 : f32 to vector<1x16x16xf32>
    %45 = arith.mulf %44, %43 : vector<1x16x16xf32>
    %c1_28 = arith.constant 1 : index
    %c1_29 = arith.constant 1 : index
    %46 = memref.load %arg1[%c1_28, %c1_29] : memref<8x3xf32, #tpu.memory_space<smem>>
    %47 = vector.extract_strided_slice %0 {offsets = [0, 1, 0, 0], sizes = [1, 1, 16, 16], strides = [1, 1, 1, 1]} : vector<1x3x16x16xf32> to vector<1x1x16x16xf32>
    %48 = vector.shape_cast %47 : vector<1x1x16x16xf32> to vector<1x16x16xf32>
    %49 = vector.broadcast %46 : f32 to vector<1x16x16xf32>
    %50 = arith.mulf %49, %48 : vector<1x16x16xf32>
    %51 = arith.addf %45, %50 : vector<1x16x16xf32>
    %c1_30 = arith.constant 1 : index
    %c2_31 = arith.constant 2 : index
    %52 = memref.load %arg1[%c1_30, %c2_31] : memref<8x3xf32, #tpu.memory_space<smem>>
    %53 = vector.extract_strided_slice %0 {offsets = [0, 2, 0, 0], sizes = [1, 1, 16, 16], strides = [1, 1, 1, 1]} : vector<1x3x16x16xf32> to vector<1x1x16x16xf32>
    %54 = vector.shape_cast %53 : vector<1x1x16x16xf32> to vector<1x16x16xf32>
    %55 = vector.broadcast %52 : f32 to vector<1x16x16xf32>
    %56 = arith.mulf %55, %54 : vector<1x16x16xf32>
    %57 = arith.addf %51, %56 : vector<1x16x16xf32>
    %58 = vector.broadcast %34 : f32 to vector<1x16x16xf32>
    %59 = arith.addf %57, %58 : vector<1x16x16xf32>
    %cst_32 = arith.constant 0.000000e+00 : f32
    %60 = vector.broadcast %cst_32 : f32 to vector<1x16x16xf32>
    %61 = arith.maximumf %59, %60 : vector<1x16x16xf32>
    %cst_33 = arith.constant 1.000000e+00 : f32
    %62 = vector.broadcast %cst_33 : f32 to vector<1x16x16xf32>
    %63 = arith.minimumf %61, %62 : vector<1x16x16xf32>
    %c0_34 = arith.constant 0 : index
    %c1_35 = arith.constant 1 : index
    %c1_36 = arith.constant 1 : index
    %c1_37 = arith.constant 1 : index
    %64 = vector.load %arg4[%c0_34, %c1_35, %c1_36, %c1_37] : memref<1x8x18x18xf32, #tpu.memory_space<vmem>>, vector<1x1x16x16xf32>
    %65 = vector.shape_cast %64 : vector<1x1x16x16xf32> to vector<1x16x16xf32>
    %66 = vector.shape_cast %63 : vector<1x16x16xf32> to vector<1x1x16x16xf32>
    tpu.vector_store %arg4[%c0_34, %c1_35, %c1_36, %c1_37], %66 {strides = array<i32>} : memref<1x8x18x18xf32, #tpu.memory_space<vmem>>, vector<1x1x16x16xf32>,
    %c2_38 = arith.constant 2 : index
    %67 = memref.load %arg2[%c2_38] : memref<8xf32, #tpu.memory_space<smem>>
    %cst_39 = arith.constant 0.000000e+00 : f32
    %68 = arith.maximumf %67, %cst_39 : f32
    %cst_40 = arith.constant 1.000000e+00 : f32
    %69 = arith.minimumf %68, %cst_40 : f32
    %70 = vector.broadcast %69 : f32 to vector<1x18x18xf32>
    %c0_41 = arith.constant 0 : index
    %c2_42 = arith.constant 2 : index
    %c0_43 = arith.constant 0 : index
    %c0_44 = arith.constant 0 : index
    %71 = vector.load %arg4[%c0_41, %c2_42, %c0_43, %c0_44] : memref<1x8x18x18xf32, #tpu.memory_space<vmem>>, vector<1x1x18x18xf32>
    %72 = vector.shape_cast %71 : vector<1x1x18x18xf32> to vector<1x18x18xf32>
    %73 = vector.shape_cast %70 : vector<1x18x18xf32> to vector<1x1x18x18xf32>
    tpu.vector_store %arg4[%c0_41, %c2_42, %c0_43, %c0_44], %73 {strides = array<i32>} : memref<1x8x18x18xf32, #tpu.memory_space<vmem>>, vector<1x1x18x18xf32>,
    %c2_45 = arith.constant 2 : index
    %c0_46 = arith.constant 0 : index
    %74 = memref.load %arg1[%c2_45, %c0_46] : memref<8x3xf32, #tpu.memory_space<smem>>
    %75 = vector.extract_strided_slice %0 {offsets = [0, 0, 0, 0], sizes = [1, 1, 16, 16], strides = [1, 1, 1, 1]} : vector<1x3x16x16xf32> to vector<1x1x16x16xf32>
    %76 = vector.shape_cast %75 : vector<1x1x16x16xf32> to vector<1x16x16xf32>
    %77 = vector.broadcast %74 : f32 to vector<1x16x16xf32>
    %78 = arith.mulf %77, %76 : vector<1x16x16xf32>
    %c2_47 = arith.constant 2 : index
    %c1_48 = arith.constant 1 : index
    %79 = memref.load %arg1[%c2_47, %c1_48] : memref<8x3xf32, #tpu.memory_space<smem>>
    %80 = vector.extract_strided_slice %0 {offsets = [0, 1, 0, 0], sizes = [1, 1, 16, 16], strides = [1, 1, 1, 1]} : vector<1x3x16x16xf32> to vector<1x1x16x16xf32>
    %81 = vector.shape_cast %80 : vector<1x1x16x16xf32> to vector<1x16x16xf32>
    %82 = vector.broadcast %79 : f32 to vector<1x16x16xf32>
    %83 = arith.mulf %82, %81 : vector<1x16x16xf32>
    %84 = arith.addf %78, %83 : vector<1x16x16xf32>
    %c2_49 = arith.constant 2 : index
    %c2_50 = arith.constant 2 : index
    %85 = memref.load %arg1[%c2_49, %c2_50] : memref<8x3xf32, #tpu.memory_space<smem>>
    %86 = vector.extract_strided_slice %0 {offsets = [0, 2, 0, 0], sizes = [1, 1, 16, 16], strides = [1, 1, 1, 1]} : vector<1x3x16x16xf32> to vector<1x1x16x16xf32>
    %87 = vector.shape_cast %86 : vector<1x1x16x16xf32> to vector<1x16x16xf32>
    %88 = vector.broadcast %85 : f32 to vector<1x16x16xf32>
    %89 = arith.mulf %88, %87 : vector<1x16x16xf32>
    %90 = arith.addf %84, %89 : vector<1x16x16xf32>
    %91 = vector.broadcast %67 : f32 to vector<1x16x16xf32>
    %92 = arith.addf %90, %91 : vector<1x16x16xf32>
    %cst_51 = arith.constant 0.000000e+00 : f32
    %93 = vector.broadcast %cst_51 : f32 to vector<1x16x16xf32>
    %94 = arith.maximumf %92, %93 : vector<1x16x16xf32>
    %cst_52 = arith.constant 1.000000e+00 : f32
    %95 = vector.broadcast %cst_52 : f32 to vector<1x16x16xf32>
    %96 = arith.minimumf %94, %95 : vector<1x16x16xf32>
    %c0_53 = arith.constant 0 : index
    %c2_54 = arith.constant 2 : index
    %c1_55 = arith.constant 1 : index
    %c1_56 = arith.constant 1 : index
    %97 = vector.load %arg4[%c0_53, %c2_54, %c1_55, %c1_56] : memref<1x8x18x18xf32, #tpu.memory_space<vmem>>, vector<1x1x16x16xf32>
    %98 = vector.shape_cast %97 : vector<1x1x16x16xf32> to vector<1x16x16xf32>
    %99 = vector.shape_cast %96 : vector<1x16x16xf32> to vector<1x1x16x16xf32>
    tpu.vector_store %arg4[%c0_53, %c2_54, %c1_55, %c1_56], %99 {strides = array<i32>} : memref<1x8x18x18xf32, #tpu.memory_space<vmem>>, vector<1x1x16x16xf32>,
    %c3 = arith.constant 3 : index
    %100 = memref.load %arg2[%c3] : memref<8xf32, #tpu.memory_space<smem>>
    %cst_57 = arith.constant 0.000000e+00 : f32
    %101 = arith.maximumf %100, %cst_57 : f32
    %cst_58 = arith.constant 1.000000e+00 : f32
    %102 = arith.minimumf %101, %cst_58 : f32
    %103 = vector.broadcast %102 : f32 to vector<1x18x18xf32>
    %c0_59 = arith.constant 0 : index
    %c3_60 = arith.constant 3 : index
    %c0_61 = arith.constant 0 : index
    %c0_62 = arith.constant 0 : index
    %104 = vector.load %arg4[%c0_59, %c3_60, %c0_61, %c0_62] : memref<1x8x18x18xf32, #tpu.memory_space<vmem>>, vector<1x1x18x18xf32>
    %105 = vector.shape_cast %104 : vector<1x1x18x18xf32> to vector<1x18x18xf32>
    %106 = vector.shape_cast %103 : vector<1x18x18xf32> to vector<1x1x18x18xf32>
    tpu.vector_store %arg4[%c0_59, %c3_60, %c0_61, %c0_62], %106 {strides = array<i32>} : memref<1x8x18x18xf32, #tpu.memory_space<vmem>>, vector<1x1x18x18xf32>,
    %c3_63 = arith.constant 3 : index
    %c0_64 = arith.constant 0 : index
    %107 = memref.load %arg1[%c3_63, %c0_64] : memref<8x3xf32, #tpu.memory_space<smem>>
    %108 = vector.extract_strided_slice %0 {offsets = [0, 0, 0, 0], sizes = [1, 1, 16, 16], strides = [1, 1, 1, 1]} : vector<1x3x16x16xf32> to vector<1x1x16x16xf32>
    %109 = vector.shape_cast %108 : vector<1x1x16x16xf32> to vector<1x16x16xf32>
    %110 = vector.broadcast %107 : f32 to vector<1x16x16xf32>
    %111 = arith.mulf %110, %109 : vector<1x16x16xf32>
    %c3_65 = arith.constant 3 : index
    %c1_66 = arith.constant 1 : index
    %112 = memref.load %arg1[%c3_65, %c1_66] : memref<8x3xf32, #tpu.memory_space<smem>>
    %113 = vector.extract_strided_slice %0 {offsets = [0, 1, 0, 0], sizes = [1, 1, 16, 16], strides = [1, 1, 1, 1]} : vector<1x3x16x16xf32> to vector<1x1x16x16xf32>
    %114 = vector.shape_cast %113 : vector<1x1x16x16xf32> to vector<1x16x16xf32>
    %115 = vector.broadcast %112 : f32 to vector<1x16x16xf32>
    %116 = arith.mulf %115, %114 : vector<1x16x16xf32>
    %117 = arith.addf %111, %116 : vector<1x16x16xf32>
    %c3_67 = arith.constant 3 : index
    %c2_68 = arith.constant 2 : index
    %118 = memref.load %arg1[%c3_67, %c2_68] : memref<8x3xf32, #tpu.memory_space<smem>>
    %119 = vector.extract_strided_slice %0 {offsets = [0, 2, 0, 0], sizes = [1, 1, 16, 16], strides = [1, 1, 1, 1]} : vector<1x3x16x16xf32> to vector<1x1x16x16xf32>
    %120 = vector.shape_cast %119 : vector<1x1x16x16xf32> to vector<1x16x16xf32>
    %121 = vector.broadcast %118 : f32 to vector<1x16x16xf32>
    %122 = arith.mulf %121, %120 : vector<1x16x16xf32>
    %123 = arith.addf %117, %122 : vector<1x16x16xf32>
    %124 = vector.broadcast %100 : f32 to vector<1x16x16xf32>
    %125 = arith.addf %123, %124 : vector<1x16x16xf32>
    %cst_69 = arith.constant 0.000000e+00 : f32
    %126 = vector.broadcast %cst_69 : f32 to vector<1x16x16xf32>
    %127 = arith.maximumf %125, %126 : vector<1x16x16xf32>
    %cst_70 = arith.constant 1.000000e+00 : f32
    %128 = vector.broadcast %cst_70 : f32 to vector<1x16x16xf32>
    %129 = arith.minimumf %127, %128 : vector<1x16x16xf32>
    %c0_71 = arith.constant 0 : index
    %c3_72 = arith.constant 3 : index
    %c1_73 = arith.constant 1 : index
    %c1_74 = arith.constant 1 : index
    %130 = vector.load %arg4[%c0_71, %c3_72, %c1_73, %c1_74] : memref<1x8x18x18xf32, #tpu.memory_space<vmem>>, vector<1x1x16x16xf32>
    %131 = vector.shape_cast %130 : vector<1x1x16x16xf32> to vector<1x16x16xf32>
    %132 = vector.shape_cast %129 : vector<1x16x16xf32> to vector<1x1x16x16xf32>
    tpu.vector_store %arg4[%c0_71, %c3_72, %c1_73, %c1_74], %132 {strides = array<i32>} : memref<1x8x18x18xf32, #tpu.memory_space<vmem>>, vector<1x1x16x16xf32>,
    %c4 = arith.constant 4 : index
    %133 = memref.load %arg2[%c4] : memref<8xf32, #tpu.memory_space<smem>>
    %cst_75 = arith.constant 0.000000e+00 : f32
    %134 = arith.maximumf %133, %cst_75 : f32
    %cst_76 = arith.constant 1.000000e+00 : f32
    %135 = arith.minimumf %134, %cst_76 : f32
    %136 = vector.broadcast %135 : f32 to vector<1x18x18xf32>
    %c0_77 = arith.constant 0 : index
    %c4_78 = arith.constant 4 : index
    %c0_79 = arith.constant 0 : index
    %c0_80 = arith.constant 0 : index
    %137 = vector.load %arg4[%c0_77, %c4_78, %c0_79, %c0_80] : memref<1x8x18x18xf32, #tpu.memory_space<vmem>>, vector<1x1x18x18xf32>
    %138 = vector.shape_cast %137 : vector<1x1x18x18xf32> to vector<1x18x18xf32>
    %139 = vector.shape_cast %136 : vector<1x18x18xf32> to vector<1x1x18x18xf32>
    tpu.vector_store %arg4[%c0_77, %c4_78, %c0_79, %c0_80], %139 {strides = array<i32>} : memref<1x8x18x18xf32, #tpu.memory_space<vmem>>, vector<1x1x18x18xf32>,
    %c4_81 = arith.constant 4 : index
    %c0_82 = arith.constant 0 : index
    %140 = memref.load %arg1[%c4_81, %c0_82] : memref<8x3xf32, #tpu.memory_space<smem>>
    %141 = vector.extract_strided_slice %0 {offsets = [0, 0, 0, 0], sizes = [1, 1, 16, 16], strides = [1, 1, 1, 1]} : vector<1x3x16x16xf32> to vector<1x1x16x16xf32>
    %142 = vector.shape_cast %141 : vector<1x1x16x16xf32> to vector<1x16x16xf32>
    %143 = vector.broadcast %140 : f32 to vector<1x16x16xf32>
    %144 = arith.mulf %143, %142 : vector<1x16x16xf32>
    %c4_83 = arith.constant 4 : index
    %c1_84 = arith.constant 1 : index
    %145 = memref.load %arg1[%c4_83, %c1_84] : memref<8x3xf32, #tpu.memory_space<smem>>
    %146 = vector.extract_strided_slice %0 {offsets = [0, 1, 0, 0], sizes = [1, 1, 16, 16], strides = [1, 1, 1, 1]} : vector<1x3x16x16xf32> to vector<1x1x16x16xf32>
    %147 = vector.shape_cast %146 : vector<1x1x16x16xf32> to vector<1x16x16xf32>
    %148 = vector.broadcast %145 : f32 to vector<1x16x16xf32>
    %149 = arith.mulf %148, %147 : vector<1x16x16xf32>
    %150 = arith.addf %144, %149 : vector<1x16x16xf32>
    %c4_85 = arith.constant 4 : index
    %c2_86 = arith.constant 2 : index
    %151 = memref.load %arg1[%c4_85, %c2_86] : memref<8x3xf32, #tpu.memory_space<smem>>
    %152 = vector.extract_strided_slice %0 {offsets = [0, 2, 0, 0], sizes = [1, 1, 16, 16], strides = [1, 1, 1, 1]} : vector<1x3x16x16xf32> to vector<1x1x16x16xf32>
    %153 = vector.shape_cast %152 : vector<1x1x16x16xf32> to vector<1x16x16xf32>
    %154 = vector.broadcast %151 : f32 to vector<1x16x16xf32>
    %155 = arith.mulf %154, %153 : vector<1x16x16xf32>
    %156 = arith.addf %150, %155 : vector<1x16x16xf32>
    %157 = vector.broadcast %133 : f32 to vector<1x16x16xf32>
    %158 = arith.addf %156, %157 : vector<1x16x16xf32>
    %cst_87 = arith.constant 0.000000e+00 : f32
    %159 = vector.broadcast %cst_87 : f32 to vector<1x16x16xf32>
    %160 = arith.maximumf %158, %159 : vector<1x16x16xf32>
    %cst_88 = arith.constant 1.000000e+00 : f32
    %161 = vector.broadcast %cst_88 : f32 to vector<1x16x16xf32>
    %162 = arith.minimumf %160, %161 : vector<1x16x16xf32>
    %c0_89 = arith.constant 0 : index
    %c4_90 = arith.constant 4 : index
    %c1_91 = arith.constant 1 : index
    %c1_92 = arith.constant 1 : index
    %163 = vector.load %arg4[%c0_89, %c4_90, %c1_91, %c1_92] : memref<1x8x18x18xf32, #tpu.memory_space<vmem>>, vector<1x1x16x16xf32>
    %164 = vector.shape_cast %163 : vector<1x1x16x16xf32> to vector<1x16x16xf32>
    %165 = vector.shape_cast %162 : vector<1x16x16xf32> to vector<1x1x16x16xf32>
    tpu.vector_store %arg4[%c0_89, %c4_90, %c1_91, %c1_92], %165 {strides = array<i32>} : memref<1x8x18x18xf32, #tpu.memory_space<vmem>>, vector<1x1x16x16xf32>,
    %c5 = arith.constant 5 : index
    %166 = memref.load %arg2[%c5] : memref<8xf32, #tpu.memory_space<smem>>
    %cst_93 = arith.constant 0.000000e+00 : f32
    %167 = arith.maximumf %166, %cst_93 : f32
    %cst_94 = arith.constant 1.000000e+00 : f32
    %168 = arith.minimumf %167, %cst_94 : f32
    %169 = vector.broadcast %168 : f32 to vector<1x18x18xf32>
    %c0_95 = arith.constant 0 : index
    %c5_96 = arith.constant 5 : index
    %c0_97 = arith.constant 0 : index
    %c0_98 = arith.constant 0 : index
    %170 = vector.load %arg4[%c0_95, %c5_96, %c0_97, %c0_98] : memref<1x8x18x18xf32, #tpu.memory_space<vmem>>, vector<1x1x18x18xf32>
    %171 = vector.shape_cast %170 : vector<1x1x18x18xf32> to vector<1x18x18xf32>
    %172 = vector.shape_cast %169 : vector<1x18x18xf32> to vector<1x1x18x18xf32>
    tpu.vector_store %arg4[%c0_95, %c5_96, %c0_97, %c0_98], %172 {strides = array<i32>} : memref<1x8x18x18xf32, #tpu.memory_space<vmem>>, vector<1x1x18x18xf32>,
    %c5_99 = arith.constant 5 : index
    %c0_100 = arith.constant 0 : index
    %173 = memref.load %arg1[%c5_99, %c0_100] : memref<8x3xf32, #tpu.memory_space<smem>>
    %174 = vector.extract_strided_slice %0 {offsets = [0, 0, 0, 0], sizes = [1, 1, 16, 16], strides = [1, 1, 1, 1]} : vector<1x3x16x16xf32> to vector<1x1x16x16xf32>
    %175 = vector.shape_cast %174 : vector<1x1x16x16xf32> to vector<1x16x16xf32>
    %176 = vector.broadcast %173 : f32 to vector<1x16x16xf32>
    %177 = arith.mulf %176, %175 : vector<1x16x16xf32>
    %c5_101 = arith.constant 5 : index
    %c1_102 = arith.constant 1 : index
    %178 = memref.load %arg1[%c5_101, %c1_102] : memref<8x3xf32, #tpu.memory_space<smem>>
    %179 = vector.extract_strided_slice %0 {offsets = [0, 1, 0, 0], sizes = [1, 1, 16, 16], strides = [1, 1, 1, 1]} : vector<1x3x16x16xf32> to vector<1x1x16x16xf32>
    %180 = vector.shape_cast %179 : vector<1x1x16x16xf32> to vector<1x16x16xf32>
    %181 = vector.broadcast %178 : f32 to vector<1x16x16xf32>
    %182 = arith.mulf %181, %180 : vector<1x16x16xf32>
    %183 = arith.addf %177, %182 : vector<1x16x16xf32>
    %c5_103 = arith.constant 5 : index
    %c2_104 = arith.constant 2 : index
    %184 = memref.load %arg1[%c5_103, %c2_104] : memref<8x3xf32, #tpu.memory_space<smem>>
    %185 = vector.extract_strided_slice %0 {offsets = [0, 2, 0, 0], sizes = [1, 1, 16, 16], strides = [1, 1, 1, 1]} : vector<1x3x16x16xf32> to vector<1x1x16x16xf32>
    %186 = vector.shape_cast %185 : vector<1x1x16x16xf32> to vector<1x16x16xf32>
    %187 = vector.broadcast %184 : f32 to vector<1x16x16xf32>
    %188 = arith.mulf %187, %186 : vector<1x16x16xf32>
    %189 = arith.addf %183, %188 : vector<1x16x16xf32>
    %190 = vector.broadcast %166 : f32 to vector<1x16x16xf32>
    %191 = arith.addf %189, %190 : vector<1x16x16xf32>
    %cst_105 = arith.constant 0.000000e+00 : f32
    %192 = vector.broadcast %cst_105 : f32 to vector<1x16x16xf32>
    %193 = arith.maximumf %191, %192 : vector<1x16x16xf32>
    %cst_106 = arith.constant 1.000000e+00 : f32
    %194 = vector.broadcast %cst_106 : f32 to vector<1x16x16xf32>
    %195 = arith.minimumf %193, %194 : vector<1x16x16xf32>
    %c0_107 = arith.constant 0 : index
    %c5_108 = arith.constant 5 : index
    %c1_109 = arith.constant 1 : index
    %c1_110 = arith.constant 1 : index
    %196 = vector.load %arg4[%c0_107, %c5_108, %c1_109, %c1_110] : memref<1x8x18x18xf32, #tpu.memory_space<vmem>>, vector<1x1x16x16xf32>
    %197 = vector.shape_cast %196 : vector<1x1x16x16xf32> to vector<1x16x16xf32>
    %198 = vector.shape_cast %195 : vector<1x16x16xf32> to vector<1x1x16x16xf32>
    tpu.vector_store %arg4[%c0_107, %c5_108, %c1_109, %c1_110], %198 {strides = array<i32>} : memref<1x8x18x18xf32, #tpu.memory_space<vmem>>, vector<1x1x16x16xf32>,
    %c6 = arith.constant 6 : index
    %199 = memref.load %arg2[%c6] : memref<8xf32, #tpu.memory_space<smem>>
    %cst_111 = arith.constant 0.000000e+00 : f32
    %200 = arith.maximumf %199, %cst_111 : f32
    %cst_112 = arith.constant 1.000000e+00 : f32
    %201 = arith.minimumf %200, %cst_112 : f32
    %202 = vector.broadcast %201 : f32 to vector<1x18x18xf32>
    %c0_113 = arith.constant 0 : index
    %c6_114 = arith.constant 6 : index
    %c0_115 = arith.constant 0 : index
    %c0_116 = arith.constant 0 : index
    %203 = vector.load %arg4[%c0_113, %c6_114, %c0_115, %c0_116] : memref<1x8x18x18xf32, #tpu.memory_space<vmem>>, vector<1x1x18x18xf32>
    %204 = vector.shape_cast %203 : vector<1x1x18x18xf32> to vector<1x18x18xf32>
    %205 = vector.shape_cast %202 : vector<1x18x18xf32> to vector<1x1x18x18xf32>
    tpu.vector_store %arg4[%c0_113, %c6_114, %c0_115, %c0_116], %205 {strides = array<i32>} : memref<1x8x18x18xf32, #tpu.memory_space<vmem>>, vector<1x1x18x18xf32>,
    %c6_117 = arith.constant 6 : index
    %c0_118 = arith.constant 0 : index
    %206 = memref.load %arg1[%c6_117, %c0_118] : memref<8x3xf32, #tpu.memory_space<smem>>
    %207 = vector.extract_strided_slice %0 {offsets = [0, 0, 0, 0], sizes = [1, 1, 16, 16], strides = [1, 1, 1, 1]} : vector<1x3x16x16xf32> to vector<1x1x16x16xf32>
    %208 = vector.shape_cast %207 : vector<1x1x16x16xf32> to vector<1x16x16xf32>
    %209 = vector.broadcast %206 : f32 to vector<1x16x16xf32>
    %210 = arith.mulf %209, %208 : vector<1x16x16xf32>
    %c6_119 = arith.constant 6 : index
    %c1_120 = arith.constant 1 : index
    %211 = memref.load %arg1[%c6_119, %c1_120] : memref<8x3xf32, #tpu.memory_space<smem>>
    %212 = vector.extract_strided_slice %0 {offsets = [0, 1, 0, 0], sizes = [1, 1, 16, 16], strides = [1, 1, 1, 1]} : vector<1x3x16x16xf32> to vector<1x1x16x16xf32>
    %213 = vector.shape_cast %212 : vector<1x1x16x16xf32> to vector<1x16x16xf32>
    %214 = vector.broadcast %211 : f32 to vector<1x16x16xf32>
    %215 = arith.mulf %214, %213 : vector<1x16x16xf32>
    %216 = arith.addf %210, %215 : vector<1x16x16xf32>
    %c6_121 = arith.constant 6 : index
    %c2_122 = arith.constant 2 : index
    %217 = memref.load %arg1[%c6_121, %c2_122] : memref<8x3xf32, #tpu.memory_space<smem>>
    %218 = vector.extract_strided_slice %0 {offsets = [0, 2, 0, 0], sizes = [1, 1, 16, 16], strides = [1, 1, 1, 1]} : vector<1x3x16x16xf32> to vector<1x1x16x16xf32>
    %219 = vector.shape_cast %218 : vector<1x1x16x16xf32> to vector<1x16x16xf32>
    %220 = vector.broadcast %217 : f32 to vector<1x16x16xf32>
    %221 = arith.mulf %220, %219 : vector<1x16x16xf32>
    %222 = arith.addf %216, %221 : vector<1x16x16xf32>
    %223 = vector.broadcast %199 : f32 to vector<1x16x16xf32>
    %224 = arith.addf %222, %223 : vector<1x16x16xf32>
    %cst_123 = arith.constant 0.000000e+00 : f32
    %225 = vector.broadcast %cst_123 : f32 to vector<1x16x16xf32>
    %226 = arith.maximumf %224, %225 : vector<1x16x16xf32>
    %cst_124 = arith.constant 1.000000e+00 : f32
    %227 = vector.broadcast %cst_124 : f32 to vector<1x16x16xf32>
    %228 = arith.minimumf %226, %227 : vector<1x16x16xf32>
    %c0_125 = arith.constant 0 : index
    %c6_126 = arith.constant 6 : index
    %c1_127 = arith.constant 1 : index
    %c1_128 = arith.constant 1 : index
    %229 = vector.load %arg4[%c0_125, %c6_126, %c1_127, %c1_128] : memref<1x8x18x18xf32, #tpu.memory_space<vmem>>, vector<1x1x16x16xf32>
    %230 = vector.shape_cast %229 : vector<1x1x16x16xf32> to vector<1x16x16xf32>
    %231 = vector.shape_cast %228 : vector<1x16x16xf32> to vector<1x1x16x16xf32>
    tpu.vector_store %arg4[%c0_125, %c6_126, %c1_127, %c1_128], %231 {strides = array<i32>} : memref<1x8x18x18xf32, #tpu.memory_space<vmem>>, vector<1x1x16x16xf32>,
    %c7 = arith.constant 7 : index
    %232 = memref.load %arg2[%c7] : memref<8xf32, #tpu.memory_space<smem>>
    %cst_129 = arith.constant 0.000000e+00 : f32
    %233 = arith.maximumf %232, %cst_129 : f32
    %cst_130 = arith.constant 1.000000e+00 : f32
    %234 = arith.minimumf %233, %cst_130 : f32
    %235 = vector.broadcast %234 : f32 to vector<1x18x18xf32>
    %c0_131 = arith.constant 0 : index
    %c7_132 = arith.constant 7 : index
    %c0_133 = arith.constant 0 : index
    %c0_134 = arith.constant 0 : index
    %236 = vector.load %arg4[%c0_131, %c7_132, %c0_133, %c0_134] : memref<1x8x18x18xf32, #tpu.memory_space<vmem>>, vector<1x1x18x18xf32>
    %237 = vector.shape_cast %236 : vector<1x1x18x18xf32> to vector<1x18x18xf32>
    %238 = vector.shape_cast %235 : vector<1x18x18xf32> to vector<1x1x18x18xf32>
    tpu.vector_store %arg4[%c0_131, %c7_132, %c0_133, %c0_134], %238 {strides = array<i32>} : memref<1x8x18x18xf32, #tpu.memory_space<vmem>>, vector<1x1x18x18xf32>,
    %c7_135 = arith.constant 7 : index
    %c0_136 = arith.constant 0 : index
    %239 = memref.load %arg1[%c7_135, %c0_136] : memref<8x3xf32, #tpu.memory_space<smem>>
    %240 = vector.extract_strided_slice %0 {offsets = [0, 0, 0, 0], sizes = [1, 1, 16, 16], strides = [1, 1, 1, 1]} : vector<1x3x16x16xf32> to vector<1x1x16x16xf32>
    %241 = vector.shape_cast %240 : vector<1x1x16x16xf32> to vector<1x16x16xf32>
    %242 = vector.broadcast %239 : f32 to vector<1x16x16xf32>
    %243 = arith.mulf %242, %241 : vector<1x16x16xf32>
    %c7_137 = arith.constant 7 : index
    %c1_138 = arith.constant 1 : index
    %244 = memref.load %arg1[%c7_137, %c1_138] : memref<8x3xf32, #tpu.memory_space<smem>>
    %245 = vector.extract_strided_slice %0 {offsets = [0, 1, 0, 0], sizes = [1, 1, 16, 16], strides = [1, 1, 1, 1]} : vector<1x3x16x16xf32> to vector<1x1x16x16xf32>
    %246 = vector.shape_cast %245 : vector<1x1x16x16xf32> to vector<1x16x16xf32>
    %247 = vector.broadcast %244 : f32 to vector<1x16x16xf32>
    %248 = arith.mulf %247, %246 : vector<1x16x16xf32>
    %249 = arith.addf %243, %248 : vector<1x16x16xf32>
    %c7_139 = arith.constant 7 : index
    %c2_140 = arith.constant 2 : index
    %250 = memref.load %arg1[%c7_139, %c2_140] : memref<8x3xf32, #tpu.memory_space<smem>>
    %251 = vector.extract_strided_slice %0 {offsets = [0, 2, 0, 0], sizes = [1, 1, 16, 16], strides = [1, 1, 1, 1]} : vector<1x3x16x16xf32> to vector<1x1x16x16xf32>
    %252 = vector.shape_cast %251 : vector<1x1x16x16xf32> to vector<1x16x16xf32>
    %253 = vector.broadcast %250 : f32 to vector<1x16x16xf32>
    %254 = arith.mulf %253, %252 : vector<1x16x16xf32>
    %255 = arith.addf %249, %254 : vector<1x16x16xf32>
    %256 = vector.broadcast %232 : f32 to vector<1x16x16xf32>
    %257 = arith.addf %255, %256 : vector<1x16x16xf32>
    %cst_141 = arith.constant 0.000000e+00 : f32
    %258 = vector.broadcast %cst_141 : f32 to vector<1x16x16xf32>
    %259 = arith.maximumf %257, %258 : vector<1x16x16xf32>
    %cst_142 = arith.constant 1.000000e+00 : f32
    %260 = vector.broadcast %cst_142 : f32 to vector<1x16x16xf32>
    %261 = arith.minimumf %259, %260 : vector<1x16x16xf32>
    %c0_143 = arith.constant 0 : index
    %c7_144 = arith.constant 7 : index
    %c1_145 = arith.constant 1 : index
    %c1_146 = arith.constant 1 : index
    %262 = vector.load %arg4[%c0_143, %c7_144, %c1_145, %c1_146] : memref<1x8x18x18xf32, #tpu.memory_space<vmem>>, vector<1x1x16x16xf32>
    %263 = vector.shape_cast %262 : vector<1x1x16x16xf32> to vector<1x16x16xf32>
    %264 = vector.shape_cast %261 : vector<1x16x16xf32> to vector<1x1x16x16xf32>
    tpu.vector_store %arg4[%c0_143, %c7_144, %c1_145, %c1_146], %264 {strides = array<i32>} : memref<1x8x18x18xf32, #tpu.memory_space<vmem>>, vector<1x1x16x16xf32>,
    return
  }
  func.func @transform_0(%arg0: i32) -> (i32, i32) {
    %c0_i32 = arith.constant 0 : i32
    %c0_i32_0 = arith.constant 0 : i32
    %c0_i32_1 = arith.constant 0 : i32
    return %c0_i32, %c0_i32_0 : i32, i32
  }
  func.func @transform_1(%arg0: i32) -> i32 {
    %c0_i32 = arith.constant 0 : i32
    %c0_i32_0 = arith.constant 0 : i32
    return %c0_i32 : i32
  }
  func.func @transform_2(%arg0: i32) -> (i32, i32, i32, i32) {
    %c0_i32 = arith.constant 0 : i32
    %c0_i32_0 = arith.constant 0 : i32
    %c0_i32_1 = arith.constant 0 : i32
    %c0_i32_2 = arith.constant 0 : i32
    return %arg0, %c0_i32, %c0_i32_0, %c0_i32_1 : i32, i32, i32, i32
  }
  func.func @transform_3(%arg0: i32) -> (i32, i32, i32, i32) {
    %c0_i32 = arith.constant 0 : i32
    %c0_i32_0 = arith.constant 0 : i32
    %c0_i32_1 = arith.constant 0 : i32
    %c0_i32_2 = arith.constant 0 : i32
    return %arg0, %c0_i32, %c0_i32_0, %c0_i32_1 : i32, i32, i32, i32
  }
}

</mosaic_0001>

<llo_original>
// kernel: tpu_custom_call.1
$region0: #{tpu_custom_call.1}
  #allocation0 [shape = 'u32[]', space=smem, size = 0x4, offset = 0x4, fixed_abs, tag = 'smem constant byte address 0x4 - core index']
  #allocation1 [shape = 'u32[144,128]{1,0:T(1,128)}', space=vmem, size = 0x12000, scoped, tag = 'internal scratch']
  %s0 = inlined_call_operand.vmem [shape: f32[8,3], index: 0, kind: input, shape index: {}]
  %s1 = inlined_call_operand.vmem [shape: f32[8], index: 1, kind: input, shape index: {}]
  %s2 = inlined_call_operand.hbm [shape: f32[2,3,16,16], index: 2, kind: input, shape index: {}]
  %s3 = inlined_call_operand.vmem [shape: f32[2,8,18,18], index: 3, kind: output, shape index: {}]
  %s4 = sld [smem:[#allocation0]]
  $region57: #{tpu_custom_call.1} parent=0
    _
  %s6 = ssub.s32 1, %s4
  %s7 = scalar_select 0, %s6, %s4
  $region1: #{tpu_custom_call.1} parent=0
    #allocation2 [shape = 'u8[4096]{0}', space=smem, size = 0x1000, scoped, tag = 'input window, operand 0, single buffered']
    #allocation3 [shape = 's32[2]{0}', space=sflag, size = 0x8, scoped, tag = 'scoped memory for tpu_custom_call.1']
    #allocation4 [shape = 's32[2]{0}', space=sflag, size = 0x8, scoped, tag = 'scoped memory for tpu_custom_call.1']
    #allocation5 [shape = 'u8[512]{0}', space=smem, size = 0x200, scoped, tag = 'input window, operand 1, single buffered']
    #allocation6 [shape = 's32[1]{0}', space=sflag, size = 0x4, scoped, tag = 'scoped memory for tpu_custom_call.1']
    #allocation7 [shape = 'u8[49152]{0}', space=vmem, size = 0xc000, scoped, tag = 'input window, operand 2']
    %8 = vsyncpa [#allocation4], 0
    %9 = vsyncpa [#allocation6], 0
    %10 = vsyncpa [#allocation3], 0
    %s11 = scalar_lea.sflag [#allocation3], 1
    %12 = vsyncpa %s11, 0
    loop: start=0, step=1, limit=4
    $region2: #{tpu_custom_call.1} parent=1 // loop_pre_header
      _
    $region3: #{tpu_custom_call.1} parent=1 // loop_header
      %s14 = sphi 0, %s18
      %p15 = scmp.ge.s32.totalorder %s14, 4
      %s22 = sphi 0, %s22
      %s24 = sphi 0, %s22
      %s25 = sphi 0, %s24
      %s39 = sphi 0, %s25
      %s43 = sphi 0, %s43
      %s45 = sphi 0, %s43
      %s46 = sphi 0, %s45
      %s60 = sphi 0, %s46
      %s66 = sphi 0, %s68
      %s69 = sphi 0, %s66
      %s70 = sphi 0, %s69
      %s86 = sphi 0, %s70
      %s92 = sphi 0, %s94
      %s95 = sphi 0, %s92
      %s96 = sphi 0, %s95
      %s112 = sphi 0, %s96
    $region4: #{tpu_custom_call.1} parent=1 // loop_header_branch
      %17 = sbr.rel (%p15) target = $region8
    $region5: #{tpu_custom_call.1} parent=1 // loop_body
      %s19 = ssub.s32 %s14, 1
      %s20 = ssub.s32 %s14, 2
      %s21 = sadd.s32 %s14, 1
      %s23 = sadd.s32 %s22, 1
      %p26 = scmp.eq.s32.totalorder %s14, 1
      %p27 = scmp.ne.s32.totalorder %s22, %s24
      %p28 = scmp.eq.s32.totalorder %s14, 0
      %p29 = por %p27, %p28
      %p30 = scmp.ne.s32.totalorder %s22, %s24
      %p31 = scmp.eq.s32.totalorder %s19, 1
      %p32 = por %p30, %p31
      %p33 = scmp.ne.s32.totalorder %s24, %s25
      %p34 = scmp.eq.s32.totalorder %s19, 0
      %p35 = por %p33, %p34
      %p36 = scmp.ne.s32.totalorder %s24, %s25
      %p37 = scmp.eq.s32.totalorder %s20, 1
      %p38 = por %p36, %p37
      %p40 = scmp.ne.s32.totalorder %s25, %s39
      %p41 = scmp.eq.s32.totalorder %s20, 0
      %p42 = por %p40, %p41
      %s44 = sadd.s32 %s43, 1
      %p47 = scmp.eq.s32.totalorder %s14, 1
      %p48 = scmp.ne.s32.totalorder %s43, %s45
      %p49 = scmp.eq.s32.totalorder %s14, 0
      %p50 = por %p48, %p49
      %p51 = scmp.ne.s32.totalorder %s43, %s45
      %p52 = scmp.eq.s32.totalorder %s19, 1
      %p53 = por %p51, %p52
      %p54 = scmp.ne.s32.totalorder %s45, %s46
      %p55 = scmp.eq.s32.totalorder %s19, 0
      %p56 = por %p54, %p55
      %p57 = scmp.ne.s32.totalorder %s45, %s46
      %p58 = scmp.eq.s32.totalorder %s20, 1
      %p59 = por %p57, %p58
      %p61 = scmp.ne.s32.totalorder %s46, %s60
      %p62 = scmp.eq.s32.totalorder %s20, 0
      %p63 = por %p61, %p62
      %s64 = ssub.s32 %s14, %s21
      %p65 = scmp.eq.s32.totalorder %s64, 0
      %s67 = sadd.s32 %s66, 1
      %s68 = scalar_select %p65, %s66, %s67
      %p71 = pneg %p65
      %p72 = scmp.eq.s32.totalorder %s14, 1
      %p73 = por %p71, %p72
      %p74 = scmp.ne.s32.totalorder %s66, %s69
      %p75 = scmp.eq.s32.totalorder %s14, 0
      %p76 = por %p74, %p75
      %p77 = scmp.ne.s32.totalorder %s66, %s69
      %p78 = scmp.eq.s32.totalorder %s19, 1
      %p79 = por %p77, %p78
      %p80 = scmp.ne.s32.totalorder %s69, %s70
      %p81 = scmp.eq.s32.totalorder %s19, 0
      %p82 = por %p80, %p81
      %p83 = scmp.ne.s32.totalorder %s69, %s70
      %p84 = scmp.eq.s32.totalorder %s20, 1
      %p85 = por %p83, %p84
      %p87 = scmp.ne.s32.totalorder %s70, %s86
      %p88 = scmp.eq.s32.totalorder %s20, 0
      %p89 = por %p87, %p88
      %s90 = ssub.s32 %s14, %s21
      %p91 = scmp.eq.s32.totalorder %s90, 0
      %s93 = sadd.s32 %s92, 1
      %s94 = scalar_select %p91, %s92, %s93
      %p97 = pneg %p91
      %p98 = scmp.eq.s32.totalorder %s14, 1
      %p99 = por %p97, %p98
      %p100 = scmp.ne.s32.totalorder %s92, %s95
      %p101 = scmp.eq.s32.totalorder %s14, 0
      %p102 = por %p100, %p101
      %p103 = scmp.ne.s32.totalorder %s92, %s95
      %p104 = scmp.eq.s32.totalorder %s19, 1
      %p105 = por %p103, %p104
      %p106 = scmp.ne.s32.totalorder %s95, %s96
      %p107 = scmp.eq.s32.totalorder %s19, 0
      %p108 = por %p106, %p107
      %p109 = scmp.ne.s32.totalorder %s95, %s96
      %p110 = scmp.eq.s32.totalorder %s20, 1
      %p111 = por %p109, %p110
      %p113 = scmp.ne.s32.totalorder %s96, %s112
      %p114 = scmp.eq.s32.totalorder %s20, 0
      %p115 = por %p113, %p114
      %p116 = scmp.le.s32.totalorder 1, %s14
      %p117 = scmp.lt.s32.totalorder %s14, 3
      %p118 = pnand %p116, %p117
      %p119 = pneg %p118
      // Predicated region
      $region9: #{tpu_custom_call.1} parent=5 // pred_check
        _
      $region10: #{tpu_custom_call.1} parent=5 // pred_check_branch
        %121 = sbr.rel (%p118) target = $region12
      $region11: #{tpu_custom_call.1} parent=5 // pred_region
        %s122 = ssub.s32 %s14, 1
        // Predicated region
        $region13: #{tpu_custom_call.1} parent=11 // pred_check
          %p123 = pneg %p35
        $region14: #{tpu_custom_call.1} parent=11 // pred_check_branch
          %125 = sbr.rel (%p123) target = $region16
        $region15: #{tpu_custom_call.1} parent=11 // pred_region
          %s127 = ssub.s32 128, 128
          %128 = vsyncadd [#allocation4], %s127
          %s130 = sshll.u32 %s0, 4
          %s131 = int_to_ptr.vmem [resolvable:$true] %s130
          %133 = dma.vmem_to_smem %s131, 128, [#allocation2], [#allocation4]
        $region16: #{tpu_custom_call.1} parent=11 // pred_fallthru
          _
        // Predicated region
        $region17: #{tpu_custom_call.1} parent=11 // pred_check
          %p134 = pneg %p56
        $region18: #{tpu_custom_call.1} parent=11 // pred_check_branch
          %136 = sbr.rel (%p134) target = $region20
        $region19: #{tpu_custom_call.1} parent=11 // pred_region
          %s138 = ssub.s32 16, 16
          %139 = vsyncadd [#allocation6], %s138
          %s141 = sshll.u32 %s1, 4
          %s142 = int_to_ptr.vmem [resolvable:$true] %s141
          %144 = dma.vmem_to_smem %s142, 16, [#allocation5], [#allocation6]
        $region20: #{tpu_custom_call.1} parent=11 // pred_fallthru
          _
      $region12: #{tpu_custom_call.1} parent=5 // pred_fallthru
        _
      %p145 = scmp.lt.s32.totalorder %s14, 2
      // Predicated region
      $region21: #{tpu_custom_call.1} parent=5 // pred_check
        %p146 = pneg %p145
      $region22: #{tpu_custom_call.1} parent=5 // pred_check_branch
        %148 = sbr.rel (%p146) target = $region24
      $region23: #{tpu_custom_call.1} parent=5 // pred_region
        // Predicated region
        $region25: #{tpu_custom_call.1} parent=23 // pred_check
          %p149 = pneg %p76
        $region26: #{tpu_custom_call.1} parent=23 // pred_check_branch
          %151 = sbr.rel (%p149) target = $region28
        $region27: #{tpu_custom_call.1} parent=23 // pred_region
          %s152 = sand.u32 %s66, 1
          %s153 = scalar_lea.sflag [#allocation3], %s152
          %s154 = sand.u32 %s66, 1
          %s155 = smul.addr %s154, 48
          %s156 = scalar_lea.vmem [#allocation7], %s155
          %s158 = ssub.s32 768, 768
          %159 = vsyncadd %s153, %s158
          %s160 = smul.addr %s14, 6
          %s161 = smul.addr %s160, 128
          %s162 = scalar_lea.hbm %s2, %s161
          %s163 = sshll.u32 %s156, 4
          %s164 = int_to_ptr.vmem [resolvable:$true] %s163
          %169 = dma.hbm_to_vmem [thread:$0]  %s162, 768, %s164, %s153, 128, 128, 8
        $region28: #{tpu_custom_call.1} parent=23 // pred_fallthru
          _
      $region24: #{tpu_custom_call.1} parent=5 // pred_fallthru
        _
      %p170 = scmp.le.s32.totalorder 1, %s14
      %p171 = scmp.lt.s32.totalorder %s14, 3
      %p172 = pnand %p170, %p171
      %p173 = pneg %p172
      // Predicated region
      $region29: #{tpu_custom_call.1} parent=5 // pred_check
        _
      $region30: #{tpu_custom_call.1} parent=5 // pred_check_branch
        %175 = sbr.rel (%p172) target = $region32
      $region31: #{tpu_custom_call.1} parent=5 // pred_region
        %s176 = ssub.s32 %s14, 1
        // Predicated region
        $region33: #{tpu_custom_call.1} parent=31 // pred_check
          %p177 = pneg %p35
        $region34: #{tpu_custom_call.1} parent=31 // pred_check_branch
          %179 = sbr.rel (%p177) target = $region36
        $region35: #{tpu_custom_call.1} parent=31 // pred_region
          %180 = dma.done [#allocation4], 128
        $region36: #{tpu_custom_call.1} parent=31 // pred_fallthru
          _
        // Predicated region
        $region37: #{tpu_custom_call.1} parent=31 // pred_check
          %p181 = pneg %p56
        $region38: #{tpu_custom_call.1} parent=31 // pred_check_branch
          %183 = sbr.rel (%p181) target = $region40
        $region39: #{tpu_custom_call.1} parent=31 // pred_region
          %184 = dma.done [#allocation6], 16
        $region40: #{tpu_custom_call.1} parent=31 // pred_fallthru
          _
        %s185 = sand.u32 %s69, 1
        %s186 = scalar_lea.sflag [#allocation3], %s185
        %s187 = sand.u32 %s69, 1
        %s188 = smul.addr %s187, 48
        %s189 = scalar_lea.vmem [#allocation7], %s188
        // Predicated region
        $region41: #{tpu_custom_call.1} parent=31 // pred_check
          %p190 = pneg %p82
        $region42: #{tpu_custom_call.1} parent=31 // pred_check_branch
          %192 = sbr.rel (%p190) target = $region44
        $region43: #{tpu_custom_call.1} parent=31 // pred_region
          %193 = dma.done %s186, 768
        $region44: #{tpu_custom_call.1} parent=31 // pred_fallthru
          _
        %194 = sfence
        %p195 = pneg %p35
        %p196 = pneg %p32
        %p197 = pneg %p56
        %p198 = pneg %p53
        %s199 = sand.u32 %s69, 1
        %s200 = scalar_lea.sflag [#allocation3], %s199
        %s201 = sand.u32 %s69, 1
        %s202 = smul.addr %s201, 48
        %s203 = scalar_lea.vmem [#allocation7], %s202
        %p204 = pneg %p82
        %p205 = pneg %p79
        %p206 = pneg %p108
        %p207 = pneg %p105
        %p208 = scmp.lt.s32.totalorder %s19, 1
        %s209 = scalar_select %p208, %s19, 1
        %s210 = smul.addr %s209, 24
        %s211 = smul.addr %s210, 8
        %s212 = scalar_lea.vmem %s3, %s211
        %p213 = scmp.lt.s32.totalorder %s19, 1
        %s214 = scalar_select %p213, %s19, 1
        %s215 = smul.addr %s214, 24
        %s216 = smul.addr %s215, 8
        %s217 = scalar_lea.vmem %s3, %s216
        %v218 = vld [vmem:[%s189] sm:$0xff]
        %v219 = vld [vmem:[%s189 + $0x8] sm:$0xff]
        %v220 = vld [vmem:[%s189 + $0x10] sm:$0xff]
        %v221 = vld [vmem:[%s189 + $0x18] sm:$0xff]
        %v222 = vld [vmem:[%s189 + $0x20] sm:$0xff]
        %v223 = vld [vmem:[%s189 + $0x28] sm:$0xff]
        %s224 = sld [smem:[#allocation5]]
        %s225 = smax.f32 %s224, 0.0
        %s226 = smin.f32 %s225, 1.0
        %v227 = vstv %s226
        %vm228 = vcmask 146432
        %229 = vst.msk [vmem:[%s217] sm:$0xff] %vm228, %v227
        %230 = vst.msk [vmem:[%s217 + $0x8] sm:$0xff] %vm228, %v227
        %vm231 = vcmask 140288
        %232 = vst.msk [vmem:[%s217 + $0x10] sm:$0x3] %vm231, %v227
        %s233 = sld [smem:[#allocation2]]
        %v234 = vstv %s233
        %v235 = vmul.f32 %v234, %v218
        %v236 = vmul.f32 %v234, %v219
        %s237 = sld [smem:[#allocation2 + $0x1]]
        %v238 = vstv %s237
        %v239 = vmul.f32 %v238, %v220
        %v240 = vmul.f32 %v238, %v221
        %v241 = vadd.f32 %v235, %v239
        %v242 = vadd.f32 %v236, %v240
        %s243 = sld [smem:[#allocation2 + $0x2]]
        %v244 = vstv %s243
        %v245 = vmul.f32 %v244, %v222
        %v246 = vmul.f32 %v244, %v223
        %v247 = vadd.f32 %v241, %v245
        %v248 = vadd.f32 %v242, %v246
        %v249 = vstv %s224
        %v250 = vadd.f32 %v247, %v249
        %v251 = vadd.f32 %v248, %v249
        %v252 = vmax.f32 %v250, 0.0
        %v253 = vmax.f32 %v251, 0.0
        %v254 = vmin.f32 %v252, 1.0
        %v255 = vmin.f32 %v253, 1.0
        %258 = vrot.lane.b32.xlu0 %v254, 1
        %v259 = vpop.permute.xlu0 %258
        %260 = vrot.lane.b32.xlu0 %v255, 1
        %v261 = vpop.permute.xlu0 %260
        %vm264 = vcmask 138248
        %265 = vst.msk [vmem:[%s217 + $0x1] sm:$0xff] %vm264, %v259
        %266 = vst.msk [vmem:[%s217 + $0x9] sm:$0xff] %vm264, %v261
        %s267 = sld [smem:[#allocation5 + $0x1]]
        %s268 = smax.f32 %s267, 0.0
        %s269 = smin.f32 %s268, 1.0
        %v270 = vstv %s269
        %s271 = scalar_lea.vmem %s217, 24
        %272 = vst.msk [vmem:[%s271] sm:$0xff] %vm228, %v270
        %273 = vst.msk [vmem:[%s271 + $0x8] sm:$0xff] %vm228, %v270
        %274 = vst.msk [vmem:[%s271 + $0x10] sm:$0x3] %vm231, %v270
        %s275 = sld [smem:[#allocation2 + $0x80]]
        %v276 = vstv %s275
        %v277 = vmul.f32 %v276, %v218
        %v278 = vmul.f32 %v276, %v219
        %s279 = sld [smem:[#allocation2 + $0x81]]
        %v280 = vstv %s279
        %v281 = vmul.f32 %v280, %v220
        %v282 = vmul.f32 %v280, %v221
        %v283 = vadd.f32 %v277, %v281
        %v284 = vadd.f32 %v278, %v282
        %s285 = sld [smem:[#allocation2 + $0x82]]
        %v286 = vstv %s285
        %v287 = vmul.f32 %v286, %v222
        %v288 = vmul.f32 %v286, %v223
        %v289 = vadd.f32 %v283, %v287
        %v290 = vadd.f32 %v284, %v288
        %v291 = vstv %s267
        %v292 = vadd.f32 %v289, %v291
        %v293 = vadd.f32 %v290, %v291
        %v294 = vmax.f32 %v292, 0.0
        %v295 = vmax.f32 %v293, 0.0
        %v296 = vmin.f32 %v294, 1.0
        %v297 = vmin.f32 %v295, 1.0
        %300 = vrot.lane.b32.xlu0 %v296, 1
        %v301 = vpop.permute.xlu0 %300
        %302 = vrot.lane.b32.xlu0 %v297, 1
        %v303 = vpop.permute.xlu0 %302
        %306 = vst.msk [vmem:[%s271 + $0x1] sm:$0xff] %vm264, %v301
        %307 = vst.msk [vmem:[%s271 + $0x9] sm:$0xff] %vm264, %v303
        %s308 = sld [smem:[#allocation5 + $0x2]]
        %s309 = smax.f32 %s308, 0.0
        %s310 = smin.f32 %s309, 1.0
        %v311 = vstv %s310
        %s312 = scalar_lea.vmem %s217, 48
        %313 = vst.msk [vmem:[%s312] sm:$0xff] %vm228, %v311
        %314 = vst.msk [vmem:[%s312 + $0x8] sm:$0xff] %vm228, %v311
        %315 = vst.msk [vmem:[%s312 + $0x10] sm:$0x3] %vm231, %v311
        %s316 = sld [smem:[#allocation2 + $0x100]]
        %v317 = vstv %s316
        %v318 = vmul.f32 %v317, %v218
        %v319 = vmul.f32 %v317, %v219
        %s320 = sld [smem:[#allocation2 + $0x101]]
        %v321 = vstv %s320
        %v322 = vmul.f32 %v321, %v220
        %v323 = vmul.f32 %v321, %v221
        %v324 = vadd.f32 %v318, %v322
        %v325 = vadd.f32 %v319, %v323
        %s326 = sld [smem:[#allocation2 + $0x102]]
        %v327 = vstv %s326
        %v328 = vmul.f32 %v327, %v222
        %v329 = vmul.f32 %v327, %v223
        %v330 = vadd.f32 %v324, %v328
        %v331 = vadd.f32 %v325, %v329
        %v332 = vstv %s308
        %v333 = vadd.f32 %v330, %v332
        %v334 = vadd.f32 %v331, %v332
        %v335 = vmax.f32 %v333, 0.0
        %v336 = vmax.f32 %v334, 0.0
        %v337 = vmin.f32 %v335, 1.0
        %v338 = vmin.f32 %v336, 1.0
        %341 = vrot.lane.b32.xlu0 %v337, 1
        %v342 = vpop.permute.xlu0 %341
        %343 = vrot.lane.b32.xlu0 %v338, 1
        %v344 = vpop.permute.xlu0 %343
        %347 = vst.msk [vmem:[%s312 + $0x1] sm:$0xff] %vm264, %v342
        %348 = vst.msk [vmem:[%s312 + $0x9] sm:$0xff] %vm264, %v344
        %s349 = sld [smem:[#allocation5 + $0x3]]
        %s350 = smax.f32 %s349, 0.0
        %s351 = smin.f32 %s350, 1.0
        %v352 = vstv %s351
        %s353 = scalar_lea.vmem %s217, 72
        %354 = vst.msk [vmem:[%s353] sm:$0xff] %vm228, %v352
        %355 = vst.msk [vmem:[%s353 + $0x8] sm:$0xff] %vm228, %v352
        %356 = vst.msk [vmem:[%s353 + $0x10] sm:$0x3] %vm231, %v352
        %s357 = sld [smem:[#allocation2 + $0x180]]
        %v358 = vstv %s357
        %v359 = vmul.f32 %v358, %v218
        %v360 = vmul.f32 %v358, %v219
        %s361 = sld [smem:[#allocation2 + $0x181]]
        %v362 = vstv %s361
        %v363 = vmul.f32 %v362, %v220
        %v364 = vmul.f32 %v362, %v221
        %v365 = vadd.f32 %v359, %v363
        %v366 = vadd.f32 %v360, %v364
        %s367 = sld [smem:[#allocation2 + $0x182]]
        %v368 = vstv %s367
        %v369 = vmul.f32 %v368, %v222
        %v370 = vmul.f32 %v368, %v223
        %v371 = vadd.f32 %v365, %v369
        %v372 = vadd.f32 %v366, %v370
        %v373 = vstv %s349
        %v374 = vadd.f32 %v371, %v373
        %v375 = vadd.f32 %v372, %v373
        %v376 = vmax.f32 %v374, 0.0
        %v377 = vmax.f32 %v375, 0.0
        %v378 = vmin.f32 %v376, 1.0
        %v379 = vmin.f32 %v377, 1.0
        %382 = vrot.lane.b32.xlu0 %v378, 1
        %v383 = vpop.permute.xlu0 %382
        %384 = vrot.lane.b32.xlu0 %v379, 1
        %v385 = vpop.permute.xlu0 %384
        %388 = vst.msk [vmem:[%s353 + $0x1] sm:$0xff] %vm264, %v383
        %389 = vst.msk [vmem:[%s353 + $0x9] sm:$0xff] %vm264, %v385
        %s390 = sld [smem:[#allocation5 + $0x4]]
        %s391 = smax.f32 %s390, 0.0
        %s392 = smin.f32 %s391, 1.0
        %v393 = vstv %s392
        %s394 = scalar_lea.vmem %s217, 96
        %395 = vst.msk [vmem:[%s394] sm:$0xff] %vm228, %v393
        %396 = vst.msk [vmem:[%s394 + $0x8] sm:$0xff] %vm228, %v393
        %397 = vst.msk [vmem:[%s394 + $0x10] sm:$0x3] %vm231, %v393
        %s398 = sld [smem:[#allocation2 + $0x200]]
        %v399 = vstv %s398
        %v400 = vmul.f32 %v399, %v218
        %v401 = vmul.f32 %v399, %v219
        %s402 = sld [smem:[#allocation2 + $0x201]]
        %v403 = vstv %s402
        %v404 = vmul.f32 %v403, %v220
        %v405 = vmul.f32 %v403, %v221
        %v406 = vadd.f32 %v400, %v404
        %v407 = vadd.f32 %v401, %v405
        %s408 = sld [smem:[#allocation2 + $0x202]]
        %v409 = vstv %s408
        %v410 = vmul.f32 %v409, %v222
        %v411 = vmul.f32 %v409, %v223
        %v412 = vadd.f32 %v406, %v410
        %v413 = vadd.f32 %v407, %v411
        %v414 = vstv %s390
        %v415 = vadd.f32 %v412, %v414
        %v416 = vadd.f32 %v413, %v414
        %v417 = vmax.f32 %v415, 0.0
        %v418 = vmax.f32 %v416, 0.0
        %v419 = vmin.f32 %v417, 1.0
        %v420 = vmin.f32 %v418, 1.0
        %423 = vrot.lane.b32.xlu0 %v419, 1
        %v424 = vpop.permute.xlu0 %423
        %425 = vrot.lane.b32.xlu0 %v420, 1
        %v426 = vpop.permute.xlu0 %425
        %429 = vst.msk [vmem:[%s394 + $0x1] sm:$0xff] %vm264, %v424
        %430 = vst.msk [vmem:[%s394 + $0x9] sm:$0xff] %vm264, %v426
        %s431 = sld [smem:[#allocation5 + $0x5]]
        %s432 = smax.f32 %s431, 0.0
        %s433 = smin.f32 %s432, 1.0
        %v434 = vstv %s433
        %s435 = scalar_lea.vmem %s217, 120
        %436 = vst.msk [vmem:[%s435] sm:$0xff] %vm228, %v434
        %437 = vst.msk [vmem:[%s435 + $0x8] sm:$0xff] %vm228, %v434
        %438 = vst.msk [vmem:[%s435 + $0x10] sm:$0x3] %vm231, %v434
        %s439 = sld [smem:[#allocation2 + $0x280]]
        %v440 = vstv %s439
        %v441 = vmul.f32 %v440, %v218
        %v442 = vmul.f32 %v440, %v219
        %s443 = sld [smem:[#allocation2 + $0x281]]
        %v444 = vstv %s443
        %v445 = vmul.f32 %v444, %v220
        %v446 = vmul.f32 %v444, %v221
        %v447 = vadd.f32 %v441, %v445
        %v448 = vadd.f32 %v442, %v446
        %s449 = sld [smem:[#allocation2 + $0x282]]
        %v450 = vstv %s449
        %v451 = vmul.f32 %v450, %v222
        %v452 = vmul.f32 %v450, %v223
        %v453 = vadd.f32 %v447, %v451
        %v454 = vadd.f32 %v448, %v452
        %v455 = vstv %s431
        %v456 = vadd.f32 %v453, %v455
        %v457 = vadd.f32 %v454, %v455
        %v458 = vmax.f32 %v456, 0.0
        %v459 = vmax.f32 %v457, 0.0
        %v460 = vmin.f32 %v458, 1.0
        %v461 = vmin.f32 %v459, 1.0
        %464 = vrot.lane.b32.xlu0 %v460, 1
        %v465 = vpop.permute.xlu0 %464
        %466 = vrot.lane.b32.xlu0 %v461, 1
        %v467 = vpop.permute.xlu0 %466
        %470 = vst.msk [vmem:[%s435 + $0x1] sm:$0xff] %vm264, %v465
        %471 = vst.msk [vmem:[%s435 + $0x9] sm:$0xff] %vm264, %v467
        %s472 = sld [smem:[#allocation5 + $0x6]]
        %s473 = smax.f32 %s472, 0.0
        %s474 = smin.f32 %s473, 1.0
        %v475 = vstv %s474
        %s476 = scalar_lea.vmem %s217, 144
        %477 = vst.msk [vmem:[%s476] sm:$0xff] %vm228, %v475
        %478 = vst.msk [vmem:[%s476 + $0x8] sm:$0xff] %vm228, %v475
        %479 = vst.msk [vmem:[%s476 + $0x10] sm:$0x3] %vm231, %v475
        %s480 = sld [smem:[#allocation2 + $0x300]]
        %v481 = vstv %s480
        %v482 = vmul.f32 %v481, %v218
        %v483 = vmul.f32 %v481, %v219
        %s484 = sld [smem:[#allocation2 + $0x301]]
        %v485 = vstv %s484
        %v486 = vmul.f32 %v485, %v220
        %v487 = vmul.f32 %v485, %v221
        %v488 = vadd.f32 %v482, %v486
        %v489 = vadd.f32 %v483, %v487
        %s490 = sld [smem:[#allocation2 + $0x302]]
        %v491 = vstv %s490
        %v492 = vmul.f32 %v491, %v222
        %v493 = vmul.f32 %v491, %v223
        %v494 = vadd.f32 %v488, %v492
        %v495 = vadd.f32 %v489, %v493
        %v496 = vstv %s472
        %v497 = vadd.f32 %v494, %v496
        %v498 = vadd.f32 %v495, %v496
        %v499 = vmax.f32 %v497, 0.0
        %v500 = vmax.f32 %v498, 0.0
        %v501 = vmin.f32 %v499, 1.0
        %v502 = vmin.f32 %v500, 1.0
        %505 = vrot.lane.b32.xlu0 %v501, 1
        %v506 = vpop.permute.xlu0 %505
        %507 = vrot.lane.b32.xlu0 %v502, 1
        %v508 = vpop.permute.xlu0 %507
        %511 = vst.msk [vmem:[%s476 + $0x1] sm:$0xff] %vm264, %v506
        %512 = vst.msk [vmem:[%s476 + $0x9] sm:$0xff] %vm264, %v508
        %s513 = sld [smem:[#allocation5 + $0x7]]
        %s514 = smax.f32 %s513, 0.0
        %s515 = smin.f32 %s514, 1.0
        %v516 = vstv %s515
        %s517 = scalar_lea.vmem %s217, 168
        %518 = vst.msk [vmem:[%s517] sm:$0xff] %vm228, %v516
        %519 = vst.msk [vmem:[%s517 + $0x8] sm:$0xff] %vm228, %v516
        %520 = vst.msk [vmem:[%s517 + $0x10] sm:$0x3] %vm231, %v516
        %s521 = sld [smem:[#allocation2 + $0x380]]
        %v522 = vstv %s521
        %v523 = vmul.f32 %v522, %v218
        %v524 = vmul.f32 %v522, %v219
        %s525 = sld [smem:[#allocation2 + $0x381]]
        %v526 = vstv %s525
        %v527 = vmul.f32 %v526, %v220
        %v528 = vmul.f32 %v526, %v221
        %v529 = vadd.f32 %v523, %v527
        %v530 = vadd.f32 %v524, %v528
        %s531 = sld [smem:[#allocation2 + $0x382]]
        %v532 = vstv %s531
        %v533 = vmul.f32 %v532, %v222
        %v534 = vmul.f32 %v532, %v223
        %v535 = vadd.f32 %v529, %v533
        %v536 = vadd.f32 %v530, %v534
        %v537 = vstv %s513
        %v538 = vadd.f32 %v535, %v537
        %v539 = vadd.f32 %v536, %v537
        %v540 = vmax.f32 %v538, 0.0
        %v541 = vmax.f32 %v539, 0.0
        %v542 = vmin.f32 %v540, 1.0
        %v543 = vmin.f32 %v541, 1.0
        %546 = vrot.lane.b32.xlu0 %v542, 1
        %v547 = vpop.permute.xlu0 %546
        %548 = vrot.lane.b32.xlu0 %v543, 1
        %v549 = vpop.permute.xlu0 %548
        %552 = vst.msk [vmem:[%s517 + $0x1] sm:$0xff] %vm264, %v547
        %553 = vst.msk [vmem:[%s517 + $0x9] sm:$0xff] %vm264, %v549
        %p554 = scmp.lt.s32.totalorder %s19, 1
        %s555 = scalar_select %p554, %s19, 1
        %s556 = smul.addr %s555, 24
        %s557 = smul.addr %s556, 8
        %s558 = scalar_lea.vmem %s3, %s557
        // Predicated region
        $region45: #{tpu_custom_call.1} parent=31 // pred_check
          %p559 = pneg %p105
        $region46: #{tpu_custom_call.1} parent=31 // pred_check_branch
          %561 = sbr.rel (%p559) target = $region48
        $region47: #{tpu_custom_call.1} parent=31 // pred_region
          _
        $region48: #{tpu_custom_call.1} parent=31 // pred_fallthru
          _
      $region32: #{tpu_custom_call.1} parent=5 // pred_fallthru
        _
      %p562 = scmp.le.s32.totalorder 2, %s14
      // Predicated region
      $region49: #{tpu_custom_call.1} parent=5 // pred_check
        %p563 = pneg %p562
      $region50: #{tpu_custom_call.1} parent=5 // pred_check_branch
        %565 = sbr.rel (%p563) target = $region52
      $region51: #{tpu_custom_call.1} parent=5 // pred_region
        %s566 = ssub.s32 %s14, 2
        // Predicated region
        $region53: #{tpu_custom_call.1} parent=51 // pred_check
          %p567 = pneg %p111
        $region54: #{tpu_custom_call.1} parent=51 // pred_check_branch
          %569 = sbr.rel (%p567) target = $region56
        $region55: #{tpu_custom_call.1} parent=51 // pred_region
          %p570 = scmp.lt.s32.totalorder %s20, 1
          %s571 = scalar_select %p570, %s20, 1
          %s572 = smul.addr %s571, 24
          %s573 = smul.addr %s572, 8
          %s574 = scalar_lea.vmem %s3, %s573
        $region56: #{tpu_custom_call.1} parent=51 // pred_fallthru
          _
      $region52: #{tpu_custom_call.1} parent=5 // pred_fallthru
        _
    $region6: #{tpu_custom_call.1} parent=1 // loop_footer
      %s18 = sadd.s32 1, %s14
    $region7: #{tpu_custom_call.1} parent=1 // loop_footer_branch
      %13 = sbr.rel target = $region3
    $region8: #{tpu_custom_call.1} parent=1 // loop_exit
      _
    %575 = vsyncpa [#allocation3], 1
    %s576 = scalar_lea.sflag [#allocation3], 1
    %577 = vsyncpa %s576, 1
    %578 = vsyncpa [#allocation4], 1
    %s579 = scalar_lea.sflag [#allocation4], 1
    %580 = vsyncpa %s579, 1
    %581 = vsyncpa [#allocation6], 1

</llo_original>
